<compile_context>
chip_gen: v7x
topology: tpu7x:2x2x1
jax: 0.10.0
libtpu: 0.0.40
codegen_flags: <defaults>
</compile_context>

<pallas_src>
import functools

import jax
import jax.numpy as jnp
from jax.experimental import pallas as pl
from jax.experimental.pallas import tpu as pltpu

LANE = 128          # lane width: every layer OUTPUT dim is zero-padded to a multiple of this
SUBLANE = 8         # f32 sublane granularity for the batch tile


def _round_up(n, m):
    return ((n + m - 1) // m) * m


def make_mlp_kernel(num_layers):
    """Kernel computing the whole (lane-padded) MLP forward for one batch tile.

    refs = (x_ref, w0_ref, b0_ref, w1_ref, b1_ref, ..., o_ref)
    ReLU after every layer except the last; final L2 normalize over the feature axis
    (matches F.normalize(x, dim=1): x / max(||x||_2, 1e-12)).
    """

    def kernel(*refs):
        x_ref = refs[0]
        o_ref = refs[-1]
        param_refs = refs[1:-1]

        h = x_ref[...]
        if h.dtype != jnp.float32:
            h = h.astype(jnp.float32)

        for i in range(num_layers):
            w = param_refs[2 * i][...]      # (in_eff_i, out_pad_i), pre-transposed & zero-padded
            b = param_refs[2 * i + 1][...]  # (1, out_pad_i), always f32
            # If weights are bf16 (MXU-native on v6e/v7x), feed the MXU bf16 operands but
            # accumulate in f32; all other math stays f32.
            lhs = h.astype(w.dtype) if w.dtype != h.dtype else h
            h = jnp.dot(lhs, w, preferred_element_type=jnp.float32) + b
            if i < num_layers - 1:
                h = jnp.maximum(h, 0.0)     # ReLU on hidden layers only

        # F.normalize(x, dim=1) == x / max(||x||, 1e-12) == x * rsqrt(max(sumsq, 1e-24)).
        # Padded output lanes are exactly zero, so they don't affect the sum of squares.
        sumsq = jnp.sum(h * h, axis=1, keepdims=True)
        inv_norm = jax.lax.rsqrt(jnp.maximum(sumsq, 1e-24))   # rsqrt runs on the EUP slot
        o_ref[...] = (h * inv_norm).astype(o_ref.dtype)

    return kernel


def prepare_params(weights, biases, input_dim, weight_dtype=jnp.float32):
    """ONE-TIME parameter prep (hoist out of the hot path).

    weights[i]: (out_i, in_i) PyTorch-style; biases[i]: (out_i,).
    Weights are transposed to (in, out); every OUTPUT dim is zero-padded to a multiple of LANE
    (so all intermediate activations and the final store are lane-dense).  Layer i>0's input dim
    is padded to the previous layer's padded output; layer 0's input dim stays = input_dim so the
    input x can stream in WITHOUT a wrapper-side pad.  Biases stay f32 (exact add after the f32
    accumulation); weights may be cast to bf16 for the v6e/v7x MXU.
    """
    params = []
    prev_out_pad = input_dim
    for w, b in zip(weights, biases):
        w = jnp.asarray(w, jnp.float32)
        b = jnp.asarray(b, jnp.float32)
        out_d, in_d = w.shape
        in_p = prev_out_pad                 # matches the (padded) width of the previous activation
        out_p = _round_up(out_d, LANE)
        w_t = jnp.zeros((in_p, out_p), jnp.float32).at[:in_d, :out_d].set(w.T)
        b_p = jnp.zeros((1, out_p), jnp.float32).at[:, :out_d].set(b[None, :])
        params.append(w_t.astype(weight_dtype))
        params.append(b_p)
        prev_out_pad = out_p
    return params


def mlp_forward(x, params, out_dim, *, block_batch=512):
    """x: (B, input_dim). params: output of prepare_params(). Returns (B, out_dim) f32."""
    batch, in_dim = x.shape
    num_layers = len(params) // 2
    out_pad = params[-1].shape[1]

    if x.dtype != jnp.float32:
        x = x.astype(jnp.float32)

    # ---- generation-aware VMEM budget -------------------------------------------------------
    weight_bytes = sum(int(p.size) * p.dtype.itemsize for p in params)   # single-buffered
    try:
        vmem_cap = pltpu.get_tpu_info().vmem_capacity_bytes              # 64 MiB v7x, 128 MiB v5e/v6e
    except Exception:
        vmem_cap = 64 * 1024 * 1024                                      # conservative fallback
    vmem_limit = min(int(vmem_cap * 7 // 8), 100 * 1024 * 1024)          # <=56 MiB v7x, 100 MiB v5e/v6e

    # Per-row activation footprint: double-buffered x tile + double-buffered out tile +
    # ~3 live f32 temporaries of the widest layer (dot output, ReLU result, scaled copy).
    feat_pads = [params[2 * j].shape[1] for j in range(num_layers)]
    max_feat = max([in_dim] + feat_pads)
    per_row_bytes = 4 * (2 * in_dim + 2 * out_pad + 3 * max_feat)
    headroom = 2 * 1024 * 1024
    avail = max(vmem_limit - weight_bytes - headroom, per_row_bytes * SUBLANE)
    tb_cap = max((avail // per_row_bytes) // SUBLANE * SUBLANE, SUBLANE)
    tb_cap = min(tb_cap, 2048)
    # TODO(synk): if weight_bytes ever exceeds the VMEM budget (large hidden dims), add an N/K
    # tiling grid axis (or stream weights layer-by-layer via pltpu.emit_pipeline) instead of the
    # all-resident-weights design.

    # ---- batch tile: single-shot when it fits, otherwise large (>=block_batch) tiles ---------
    b_ceil = _round_up(batch, SUBLANE)
    if b_ceil <= tb_cap:
        tb = b_ceil                                   # one grid step, no exposed per-step overhead
    else:
        tb = min(tb_cap, _round_up(block_batch, SUBLANE))
    b_pad = _round_up(batch, tb)

    # Only pad the batch when needed; feature dim streams in unpadded (no extra HBM pass).
    if b_pad != batch:
        x_in = jnp.zeros((b_pad, in_dim), jnp.float32).at[:batch].set(x)
    else:
        x_in = x

    grid = (b_pad // tb,)

    # x / out stream per batch tile; weights & biases are grid-invariant -> fetched once into a
    # SINGLE VMEM buffer (pl.Buffered(1)) instead of the default double-buffering.
    resident = pl.Buffered(1)
    in_specs = [pl.BlockSpec((tb, in_dim), lambda i: (i, 0))]
    for p in params:
        in_specs.append(pl.BlockSpec(p.shape, lambda i: (0, 0), pipeline_mode=resident))
    out_spec = pl.BlockSpec((tb, out_pad), lambda i: (i, 0))

    flops = 2 * b_pad * sum(
        params[2 * j].shape[0] * params[2 * j].shape[1] for j in range(num_layers))
    bytes_accessed = int(x_in.size) * 4 + weight_bytes + b_pad * out_pad * 4
    cost = pl.CostEstimate(flops=flops, transcendentals=b_pad,
                           bytes_accessed=bytes_accessed)

    out_padded = pl.pallas_call(
        make_mlp_kernel(num_layers),
        out_shape=jax.ShapeDtypeStruct((b_pad, out_pad), jnp.float32),
        grid=grid,
        in_specs=in_specs,
        out_specs=out_spec,
        compiler_params=pltpu.CompilerParams(
            dimension_semantics=("parallel",),        # independent batch tiles (megacore on v7x)
            vmem_limit_bytes=vmem_limit,
        ),
        cost_estimate=cost,
    )(x_in, *params)

    if b_pad != batch or out_pad != out_dim:
        return out_padded[:batch, :out_dim]
    return out_padded


def init_params(key, input_dim, hidden_layers, output_dim):
    """Deterministic init mimicking nn.Linear default (uniform +-1/sqrt(fan_in))."""
    dims = [input_dim] + list(hidden_layers) + [output_dim]
    weights, biases = [], []
    for i in range(len(dims) - 1):
        fan_in, fan_out = dims[i], dims[i + 1]
        key, kw, kb = jax.random.split(key, 3)
        bound = 1.0 / (fan_in ** 0.5)
        weights.append(jax.random.uniform(
            kw, (fan_out, fan_in), jnp.float32, minval=-bound, maxval=bound))
        biases.append(jax.random.uniform(
            kb, (fan_out,), jnp.float32, minval=-bound, maxval=bound))
    return weights, biases


def mlp_reference(x, weights, biases):
    """Pure-JAX reference of the PyTorch forward for a sanity check."""
    h = x
    n = len(weights)
    for i in range(n - 1):
        h = jnp.maximum(h @ weights[i].T + biases[i], 0.0)
    y = h @ weights[-1].T + biases[-1]
    norm = jnp.sqrt(jnp.sum(y * y, axis=1, keepdims=True))
    return y / jnp.maximum(norm, 1e-12)


if __name__ == "__main__":
    # Shapes consistent with the module: MLP(input_dim=16, output_dim=8, hidden_layers=[32, 32]).
    # batch=256 collapses to a single grid step (tb=256), which also fills the 256-wide MXU M dim.
    input_dim, output_dim = 16, 8
    hidden_layers = [32, 32]
    batch = 256

    key = jax.random.PRNGKey(0)
    key, kx = jax.random.split(key)
    x = jax.random.normal(kx, (batch, input_dim), jnp.float32)

    weights, biases = init_params(key, input_dim, hidden_layers, output_dim)
    ref = mlp_reference(x, weights, biases)

    fwd = jax.jit(functools.partial(mlp_forward, out_dim=output_dim))

    # f32 weights: bit-accurate path, tight tolerance vs. the pure-JAX reference.
    params_f32 = prepare_params(weights, biases, input_dim, weight_dtype=jnp.float32)
    out_f32 = jax.block_until_ready(fwd(x, params_f32))
    assert out_f32.shape == (batch, output_dim)
    assert jnp.allclose(out_f32, ref, atol=1e-5, rtol=1e-5), "f32 mismatch vs reference"

    # bf16 weights: MXU-native on v6e/v7x (2x throughput, half the weight VMEM); loose tolerance.
    params_bf16 = prepare_params(weights, biases, input_dim, weight_dtype=jnp.bfloat16)
    out_bf16 = jax.block_until_ready(fwd(x, params_bf16))
    assert out_bf16.shape == (batch, output_dim)
    assert jnp.allclose(out_bf16, ref, atol=3e-2, rtol=3e-2), "bf16 mismatch vs reference"

    # TODO(synk): Adam optimizer / training step from the module is out of scope (forward only).
    print("KERNEL_OK")
</pallas_src>

<mosaic_0001>
module attributes {stable_mosaic.version = 11 : i64} {
  func.func @kernel(%arg0: i32, %arg1: memref<256x16xf32, #tpu.memory_space<vmem>>, %arg2: memref<16x128xf32, #tpu.memory_space<vmem>>, %arg3: memref<1x128xf32, #tpu.memory_space<vmem>>, %arg4: memref<128x128xf32, #tpu.memory_space<vmem>>, %arg5: memref<1x128xf32, #tpu.memory_space<vmem>>, %arg6: memref<128x128xf32, #tpu.memory_space<vmem>>, %arg7: memref<1x128xf32, #tpu.memory_space<vmem>>, %arg8: memref<256x128xf32, #tpu.memory_space<vmem>>) attributes {dimension_semantics = [#tpu.dimension_semantics<parallel>], iteration_bounds = array<i64: 1>, scalar_prefetch = 0 : i64, scratch_operands = 0 : i64, tpu.core_type = #tpu.core_type<tc>, window_params = [{transform_indices = @transform_0, window_bounds = array<i64: 256, 16>}, {pipeline_mode = #tpu.pipeline_mode<synchronous>, transform_indices = @transform_1, window_bounds = array<i64: 16, 128>}, {pipeline_mode = #tpu.pipeline_mode<synchronous>, transform_indices = @transform_2, window_bounds = array<i64: 1, 128>}, {pipeline_mode = #tpu.pipeline_mode<synchronous>, transform_indices = @transform_3, window_bounds = array<i64: 128, 128>}, {pipeline_mode = #tpu.pipeline_mode<synchronous>, transform_indices = @transform_4, window_bounds = array<i64: 1, 128>}, {pipeline_mode = #tpu.pipeline_mode<synchronous>, transform_indices = @transform_5, window_bounds = array<i64: 128, 128>}, {pipeline_mode = #tpu.pipeline_mode<synchronous>, transform_indices = @transform_6, window_bounds = array<i64: 1, 128>}, {transform_indices = @transform_7, window_bounds = array<i64: 256, 128>}]} {
    %c0 = arith.constant 0 : index
    %c0_0 = arith.constant 0 : index
    %0 = vector.load %arg1[%c0, %c0_0] : memref<256x16xf32, #tpu.memory_space<vmem>>, vector<256x16xf32>
    %c0_1 = arith.constant 0 : index
    %c0_2 = arith.constant 0 : index
    %1 = vector.load %arg2[%c0_1, %c0_2] : memref<16x128xf32, #tpu.memory_space<vmem>>, vector<16x128xf32>
    %c0_3 = arith.constant 0 : index
    %c0_4 = arith.constant 0 : index
    %2 = vector.load %arg3[%c0_3, %c0_4] : memref<1x128xf32, #tpu.memory_space<vmem>>, vector<1x128xf32>
    %cst = arith.constant dense<0.000000e+00> : vector<256x128xf32>
    %3 = tpu.matmul %0, %1, %cst {dimension_numbers = #tpu.dot_dimension_numbers<[1], [0], [0], [1], [0, 0, 1, 1], [], []>} : vector<256x16xf32>, vector<16x128xf32>, vector<256x128xf32> -> vector<256x128xf32>
    %4 = vector.broadcast %2 : vector<1x128xf32> to vector<256x128xf32>
    %5 = arith.addf %3, %4 : vector<256x128xf32>
    %cst_5 = arith.constant 0.000000e+00 : f32
    %6 = vector.broadcast %cst_5 : f32 to vector<256x128xf32>
    %7 = arith.maximumf %5, %6 : vector<256x128xf32>
    %c0_6 = arith.constant 0 : index
    %c0_7 = arith.constant 0 : index
    %8 = vector.load %arg4[%c0_6, %c0_7] : memref<128x128xf32, #tpu.memory_space<vmem>>, vector<128x128xf32>
    %c0_8 = arith.constant 0 : index
    %c0_9 = arith.constant 0 : index
    %9 = vector.load %arg5[%c0_8, %c0_9] : memref<1x128xf32, #tpu.memory_space<vmem>>, vector<1x128xf32>
    %cst_10 = arith.constant dense<0.000000e+00> : vector<256x128xf32>
    %10 = tpu.matmul %7, %8, %cst_10 {dimension_numbers = #tpu.dot_dimension_numbers<[1], [0], [0], [1], [0, 0, 1, 1], [], []>} : vector<256x128xf32>, vector<128x128xf32>, vector<256x128xf32> -> vector<256x128xf32>
    %11 = vector.broadcast %9 : vector<1x128xf32> to vector<256x128xf32>
    %12 = arith.addf %10, %11 : vector<256x128xf32>
    %cst_11 = arith.constant 0.000000e+00 : f32
    %13 = vector.broadcast %cst_11 : f32 to vector<256x128xf32>
    %14 = arith.maximumf %12, %13 : vector<256x128xf32>
    %c0_12 = arith.constant 0 : index
    %c0_13 = arith.constant 0 : index
    %15 = vector.load %arg6[%c0_12, %c0_13] : memref<128x128xf32, #tpu.memory_space<vmem>>, vector<128x128xf32>
    %c0_14 = arith.constant 0 : index
    %c0_15 = arith.constant 0 : index
    %16 = vector.load %arg7[%c0_14, %c0_15] : memref<1x128xf32, #tpu.memory_space<vmem>>, vector<1x128xf32>
    %cst_16 = arith.constant dense<0.000000e+00> : vector<256x128xf32>
    %17 = tpu.matmul %14, %15, %cst_16 {dimension_numbers = #tpu.dot_dimension_numbers<[1], [0], [0], [1], [0, 0, 1, 1], [], []>} : vector<256x128xf32>, vector<128x128xf32>, vector<256x128xf32> -> vector<256x128xf32>
    %18 = vector.broadcast %16 : vector<1x128xf32> to vector<256x128xf32>
    %19 = arith.addf %17, %18 : vector<256x128xf32>
    %20 = arith.mulf %19, %19 : vector<256x128xf32>
    %cst_17 = arith.constant dense<0.000000e+00> : vector<256xf32>
    %21 = vector.multi_reduction <add>, %20, %cst_17 [1] : vector<256x128xf32> to vector<256xf32>
    %22 = vector.shape_cast %21 : vector<256xf32> to vector<256x1xf32>
    %cst_18 = arith.constant 1.000000e-24 : f32
    %23 = vector.broadcast %cst_18 : f32 to vector<256x1xf32>
    %24 = arith.maximumf %22, %23 : vector<256x1xf32>
    %25 = math.rsqrt %24 : vector<256x1xf32>
    %26 = vector.broadcast %25 : vector<256x1xf32> to vector<256x128xf32>
    %27 = arith.mulf %19, %26 : vector<256x128xf32>
    %c0_19 = arith.constant 0 : index
    %c0_20 = arith.constant 0 : index
    %28 = vector.load %arg8[%c0_19, %c0_20] : memref<256x128xf32, #tpu.memory_space<vmem>>, vector<256x128xf32>
    tpu.vector_store %arg8[%c0_19, %c0_20], %27 {strides = array<i32>} : memref<256x128xf32, #tpu.memory_space<vmem>>, vector<256x128xf32>,
    return
  }
  func.func @transform_0(%arg0: i32) -> (i32, i32) {
    %c0_i32 = arith.constant 0 : i32
    %c0_i32_0 = arith.constant 0 : i32
    return %arg0, %c0_i32 : i32, i32
  }
  func.func @transform_1(%arg0: i32) -> (i32, i32) {
    %c0_i32 = arith.constant 0 : i32
    %c0_i32_0 = arith.constant 0 : i32
    %c0_i32_1 = arith.constant 0 : i32
    return %c0_i32, %c0_i32_0 : i32, i32
  }
  func.func @transform_2(%arg0: i32) -> (i32, i32) {
    %c0_i32 = arith.constant 0 : i32
    %c0_i32_0 = arith.constant 0 : i32
    %c0_i32_1 = arith.constant 0 : i32
    return %c0_i32, %c0_i32_0 : i32, i32
  }
  func.func @transform_3(%arg0: i32) -> (i32, i32) {
    %c0_i32 = arith.constant 0 : i32
    %c0_i32_0 = arith.constant 0 : i32
    %c0_i32_1 = arith.constant 0 : i32
    return %c0_i32, %c0_i32_0 : i32, i32
  }
  func.func @transform_4(%arg0: i32) -> (i32, i32) {
    %c0_i32 = arith.constant 0 : i32
    %c0_i32_0 = arith.constant 0 : i32
    %c0_i32_1 = arith.constant 0 : i32
    return %c0_i32, %c0_i32_0 : i32, i32
  }
  func.func @transform_5(%arg0: i32) -> (i32, i32) {
    %c0_i32 = arith.constant 0 : i32
    %c0_i32_0 = arith.constant 0 : i32
    %c0_i32_1 = arith.constant 0 : i32
    return %c0_i32, %c0_i32_0 : i32, i32
  }
  func.func @transform_6(%arg0: i32) -> (i32, i32) {
    %c0_i32 = arith.constant 0 : i32
    %c0_i32_0 = arith.constant 0 : i32
    %c0_i32_1 = arith.constant 0 : i32
    return %c0_i32, %c0_i32_0 : i32, i32
  }
  func.func @transform_7(%arg0: i32) -> (i32, i32) {
    %c0_i32 = arith.constant 0 : i32
    %c0_i32_0 = arith.constant 0 : i32
    return %arg0, %c0_i32 : i32, i32
  }
}

</mosaic_0001>

<llo_original>
// kernel: mlp_forward.1
$region0: #{mlp_forward.1}
  #allocation0 [shape = 'u32[]', space=smem, size = 0x4, offset = 0x4, fixed_abs, tag = 'smem constant byte address 0x4 - core index']
  #allocation1 [shape = 'u32[144,128]{1,0:T(1,128)}', space=vmem, size = 0x12000, scoped, tag = 'internal scratch']
  %s0 = inlined_call_operand.vmem [shape: f32[256,16], index: 0, kind: input, shape index: {}]
  %s1 = inlined_call_operand.vmem [shape: f32[16,128], index: 1, kind: input, shape index: {}]
  %s2 = inlined_call_operand.vmem [shape: f32[1,128], index: 2, kind: input, shape index: {}]
  %s3 = inlined_call_operand.vmem [shape: f32[128,128], index: 3, kind: input, shape index: {}]
  %s4 = inlined_call_operand.vmem [shape: f32[1,128], index: 4, kind: input, shape index: {}]
  %s5 = inlined_call_operand.vmem [shape: f32[128,128], index: 5, kind: input, shape index: {}]
  %s6 = inlined_call_operand.vmem [shape: f32[1,128], index: 6, kind: input, shape index: {}]
  %s7 = inlined_call_operand.vmem [shape: f32[256,128], index: 7, kind: output, shape index: {}]
  %s8 = sld [smem:[#allocation0]]
  $region38: #{mlp_forward.1} parent=0
    _
  %s10 = ssub.s32 1, %s8
  %s11 = scalar_select 0, %s10, %s8
  // Predicated region
  $region2: #{mlp_forward.1} parent=0 // pred_check
    _
  $region3: #{mlp_forward.1} parent=0 // pred_check_branch
    %13 = sbr.rel (0) target = $region5
  $region4: #{mlp_forward.1} parent=0 // pred_region
    _
  $region5: #{mlp_forward.1} parent=0 // pred_fallthru
    _
  // Predicated region
  $region6: #{mlp_forward.1} parent=0 // pred_check
    _
  $region7: #{mlp_forward.1} parent=0 // pred_check_branch
    %15 = sbr.rel (0) target = $region9
  $region8: #{mlp_forward.1} parent=0 // pred_region
    _
  $region9: #{mlp_forward.1} parent=0 // pred_fallthru
    _
  // Predicated region
  $region10: #{mlp_forward.1} parent=0 // pred_check
    _
  $region11: #{mlp_forward.1} parent=0 // pred_check_branch
    %17 = sbr.rel (0) target = $region13
  $region12: #{mlp_forward.1} parent=0 // pred_region
    _
  $region13: #{mlp_forward.1} parent=0 // pred_fallthru
    _
  // Predicated region
  $region14: #{mlp_forward.1} parent=0 // pred_check
    _
  $region15: #{mlp_forward.1} parent=0 // pred_check_branch
    %19 = sbr.rel (0) target = $region17
  $region16: #{mlp_forward.1} parent=0 // pred_region
    _
  $region17: #{mlp_forward.1} parent=0 // pred_fallthru
    _
  // Predicated region
  $region18: #{mlp_forward.1} parent=0 // pred_check
    _
  $region19: #{mlp_forward.1} parent=0 // pred_check_branch
    %21 = sbr.rel (0) target = $region21
  $region20: #{mlp_forward.1} parent=0 // pred_region
    _
  $region21: #{mlp_forward.1} parent=0 // pred_fallthru
    _
  // Predicated region
  $region22: #{mlp_forward.1} parent=0 // pred_check
    _
  $region23: #{mlp_forward.1} parent=0 // pred_check_branch
    %23 = sbr.rel (0) target = $region25
  $region24: #{mlp_forward.1} parent=0 // pred_region
    _
  $region25: #{mlp_forward.1} parent=0 // pred_fallthru
    _
  // Predicated region
  $region26: #{mlp_forward.1} parent=0 // pred_check
    _
  $region27: #{mlp_forward.1} parent=0 // pred_check_branch
    %25 = sbr.rel (0) target = $region29
  $region28: #{mlp_forward.1} parent=0 // pred_region
    _
  $region29: #{mlp_forward.1} parent=0 // pred_fallthru
    _
  %v26 = vld [vmem:[%s0] sm:$0xff]
  %v27 = vld [vmem:[%s0 + $0x8] sm:$0xff]
  %v28 = vld [vmem:[%s0 + $0x10] sm:$0xff]
  %v29 = vld [vmem:[%s0 + $0x18] sm:$0xff]
  %v30 = vld [vmem:[%s0 + $0x20] sm:$0xff]
  %v31 = vld [vmem:[%s0 + $0x28] sm:$0xff]
  %v32 = vld [vmem:[%s0 + $0x30] sm:$0xff]
  %v33 = vld [vmem:[%s0 + $0x38] sm:$0xff]
  %v34 = vld [vmem:[%s0 + $0x40] sm:$0xff]
  %v35 = vld [vmem:[%s0 + $0x48] sm:$0xff]
  %v36 = vld [vmem:[%s0 + $0x50] sm:$0xff]
  %v37 = vld [vmem:[%s0 + $0x58] sm:$0xff]
  %v38 = vld [vmem:[%s0 + $0x60] sm:$0xff]
  %v39 = vld [vmem:[%s0 + $0x68] sm:$0xff]
  %v40 = vld [vmem:[%s0 + $0x70] sm:$0xff]
  %v41 = vld [vmem:[%s0 + $0x78] sm:$0xff]
  %v42 = vld [vmem:[%s0 + $0x80] sm:$0xff]
  %v43 = vld [vmem:[%s0 + $0x88] sm:$0xff]
  %v44 = vld [vmem:[%s0 + $0x90] sm:$0xff]
  %v45 = vld [vmem:[%s0 + $0x98] sm:$0xff]
  %v46 = vld [vmem:[%s0 + $0xa0] sm:$0xff]
  %v47 = vld [vmem:[%s0 + $0xa8] sm:$0xff]
  %v48 = vld [vmem:[%s0 + $0xb0] sm:$0xff]
  %v49 = vld [vmem:[%s0 + $0xb8] sm:$0xff]
  %v50 = vld [vmem:[%s0 + $0xc0] sm:$0xff]
  %v51 = vld [vmem:[%s0 + $0xc8] sm:$0xff]
  %v52 = vld [vmem:[%s0 + $0xd0] sm:$0xff]
  %v53 = vld [vmem:[%s0 + $0xd8] sm:$0xff]
  %v54 = vld [vmem:[%s0 + $0xe0] sm:$0xff]
  %v55 = vld [vmem:[%s0 + $0xe8] sm:$0xff]
  %v56 = vld [vmem:[%s0 + $0xf0] sm:$0xff]
  %v57 = vld [vmem:[%s0 + $0xf8] sm:$0xff]
  %v58 = vld [vmem:[%s1] sm:$0xff]
  %v59 = vld [vmem:[%s1 + $0x8] sm:$0xff]
  %v60 = vld [vmem:[%s2] sm:$0x1]
  %v62 = vlaneseq
  %v63 = vshrl.u32 %v62, 7
  %v64 = vsub.s32 0, %v63
  %v65 = vrot.slane %v60, %v64
  %vm67 = vcmask 130048
  %v69 = vsel %vm67, %v26, 0
  %v72 = vsel %vm67, %v27, 0
  %v75 = vsel %vm67, %v28, 0
  %v78 = vsel %vm67, %v29, 0
  %v81 = vsel %vm67, %v30, 0
  %v84 = vsel %vm67, %v31, 0
  %v87 = vsel %vm67, %v32, 0
  %v90 = vsel %vm67, %v33, 0
  %v93 = vsel %vm67, %v34, 0
  %v96 = vsel %vm67, %v35, 0
  %v99 = vsel %vm67, %v36, 0
  %v102 = vsel %vm67, %v37, 0
  %v105 = vsel %vm67, %v38, 0
  %v108 = vsel %vm67, %v39, 0
  %v111 = vsel %vm67, %v40, 0
  %v114 = vsel %vm67, %v41, 0
  %v117 = vsel %vm67, %v42, 0
  %v120 = vsel %vm67, %v43, 0
  %v123 = vsel %vm67, %v44, 0
  %v126 = vsel %vm67, %v45, 0
  %v129 = vsel %vm67, %v46, 0
  %v132 = vsel %vm67, %v47, 0
  %v135 = vsel %vm67, %v48, 0
  %v138 = vsel %vm67, %v49, 0
  %v141 = vsel %vm67, %v50, 0
  %v144 = vsel %vm67, %v51, 0
  %v147 = vsel %vm67, %v52, 0
  %v150 = vsel %vm67, %v53, 0
  %v153 = vsel %vm67, %v54, 0
  %v156 = vsel %vm67, %v55, 0
  %v159 = vsel %vm67, %v56, 0
  %v162 = vsel %vm67, %v57, 0
  %164 = vmatprep.subr.mxu0 0.0
  %165 = vmatpush1.msra.mxu0 %v58
  %166 = vmatprep.subr.mxu0 0.0
  %167 = vmatpush1.msra.mxu0 %v59
  %168 = vmatprep.subr.mxu0 0.0
  %169 = vmatpush1.msra.mxu0 0.0
  %170 = vmatprep.subr.mxu0 0.0
  %171 = vmatpush1.msra.mxu0 0.0
  %172 = vmatprep.subr.mxu0 0.0
  %173 = vmatpush1.msra.mxu0 0.0
  %174 = vmatprep.subr.mxu0 0.0
  %175 = vmatpush1.msra.mxu0 0.0
  %176 = vmatprep.subr.mxu0 0.0
  %177 = vmatpush1.msra.mxu0 0.0
  %178 = vmatprep.subr.mxu0 0.0
  %179 = vmatpush1.msra.mxu0 0.0
  %180 = vmatprep.subr.mxu0 0.0
  %181 = vmatpush1.msra.mxu0 0.0
  %182 = vmatprep.subr.mxu0 0.0
  %183 = vmatpush1.msra.mxu0 0.0
  %184 = vmatprep.subr.mxu0 0.0
  %185 = vmatpush1.msra.mxu0 0.0
  %186 = vmatprep.subr.mxu0 0.0
  %187 = vmatpush1.msra.mxu0 0.0
  %188 = vmatprep.subr.mxu0 0.0
  %189 = vmatpush1.msra.mxu0 0.0
  %190 = vmatprep.subr.mxu0 0.0
  %191 = vmatpush1.msra.mxu0 0.0
  %192 = vmatprep.subr.mxu0 0.0
  %193 = vmatpush1.msra.mxu0 0.0
  %194 = vmatprep.subr.mxu0 0.0
  %195 = vmatpush1.msra.mxu0 0.0
  %196 = vmatprep.subr.mxu0 0.0
  %197 = vmatpush1.msra.mxu0 0.0
  %198 = vmatprep.subr.mxu0 0.0
  %199 = vmatpush1.msra.mxu0 0.0
  %200 = vmatprep.subr.mxu0 0.0
  %201 = vmatpush1.msra.mxu0 0.0
  %202 = vmatprep.subr.mxu0 0.0
  %203 = vmatpush1.msra.mxu0 0.0
  %204 = vmatprep.subr.mxu0 0.0
  %205 = vmatpush1.msra.mxu0 0.0
  %206 = vmatprep.subr.mxu0 0.0
  %207 = vmatpush1.msra.mxu0 0.0
  %208 = vmatprep.subr.mxu0 0.0
  %209 = vmatpush1.msra.mxu0 0.0
  %210 = vmatprep.subr.mxu0 0.0
  %211 = vmatpush1.msra.mxu0 0.0
  %212 = vmatprep.subr.mxu0 0.0
  %213 = vmatpush1.msra.mxu0 0.0
  %214 = vmatprep.subr.mxu0 0.0
  %215 = vmatpush1.msra.mxu0 0.0
  %216 = vmatprep.subr.mxu0 0.0
  %217 = vmatpush1.msra.mxu0 0.0
  %218 = vmatprep.subr.mxu0 0.0
  %219 = vmatpush1.msra.mxu0 0.0
  %220 = vmatprep.subr.mxu0 0.0
  %221 = vmatpush1.msra.mxu0 0.0
  %222 = vmatprep.subr.mxu0 0.0
  %223 = vmatpush1.msra.mxu0 0.0
  %224 = vmatprep.subr.mxu0 0.0
  %225 = vmatpush1.msra.mxu0 0.0
  %226 = vmatprep.subr.mxu0 0.0
  %227 = vmatpush1.msra.mxu0 0.0
  %228 = vmatprep.mubr.f32.mxu0 0.0
  %229 = vmatmul.mubr.f32.gmra.mrb[0].mxu0 %v69
  %v230 = vpop.f32.mrb[0].mxu0
  %v231 = vadd.f32 %v65, %v230
  %v232 = vpop.f32.mrb[0].mxu0
  %233 = vmatprep.mubr.f32.mxu0 0.0
  %234 = vmatmul.mubr.f32.gmra.mrb[0].mxu0 %v72
  %v235 = vpop.f32.mrb[0].mxu0
  %v236 = vadd.f32 %v65, %v235
  %v237 = vpop.f32.mrb[0].mxu0
  %238 = vmatprep.mubr.f32.mxu0 0.0
  %239 = vmatmul.mubr.f32.gmra.mrb[0].mxu0 %v75
  %v240 = vpop.f32.mrb[0].mxu0
  %v241 = vadd.f32 %v65, %v240
  %v242 = vpop.f32.mrb[0].mxu0
  %243 = vmatprep.mubr.f32.mxu0 0.0
  %244 = vmatmul.mubr.f32.gmra.mrb[0].mxu0 %v78
  %v245 = vpop.f32.mrb[0].mxu0
  %v246 = vadd.f32 %v65, %v245
  %v247 = vpop.f32.mrb[0].mxu0
  %248 = vmatprep.mubr.f32.mxu0 0.0
  %249 = vmatmul.mubr.f32.gmra.mrb[0].mxu0 %v81
  %v250 = vpop.f32.mrb[0].mxu0
  %v251 = vadd.f32 %v65, %v250
  %v252 = vpop.f32.mrb[0].mxu0
  %253 = vmatprep.mubr.f32.mxu0 0.0
  %254 = vmatmul.mubr.f32.gmra.mrb[0].mxu0 %v84
  %v255 = vpop.f32.mrb[0].mxu0
  %v256 = vadd.f32 %v65, %v255
  %v257 = vpop.f32.mrb[0].mxu0
  %258 = vmatprep.mubr.f32.mxu0 0.0
  %259 = vmatmul.mubr.f32.gmra.mrb[0].mxu0 %v87
  %v260 = vpop.f32.mrb[0].mxu0
  %v261 = vadd.f32 %v65, %v260
  %v262 = vpop.f32.mrb[0].mxu0
  %263 = vmatprep.mubr.f32.mxu0 0.0
  %264 = vmatmul.mubr.f32.gmra.mrb[0].mxu0 %v90
  %v265 = vpop.f32.mrb[0].mxu0
  %v266 = vadd.f32 %v65, %v265
  %v267 = vpop.f32.mrb[0].mxu0
  %268 = vmatprep.mubr.f32.mxu0 0.0
  %269 = vmatmul.mubr.f32.gmra.mrb[0].mxu0 %v93
  %v270 = vpop.f32.mrb[0].mxu0
  %v271 = vadd.f32 %v65, %v270
  %v272 = vpop.f32.mrb[0].mxu0
  %273 = vmatprep.mubr.f32.mxu0 0.0
  %274 = vmatmul.mubr.f32.gmra.mrb[0].mxu0 %v96
  %v275 = vpop.f32.mrb[0].mxu0
  %v276 = vadd.f32 %v65, %v275
  %v277 = vpop.f32.mrb[0].mxu0
  %278 = vmatprep.mubr.f32.mxu0 0.0
  %279 = vmatmul.mubr.f32.gmra.mrb[0].mxu0 %v99
  %v280 = vpop.f32.mrb[0].mxu0
  %v281 = vadd.f32 %v65, %v280
  %v282 = vpop.f32.mrb[0].mxu0
  %283 = vmatprep.mubr.f32.mxu0 0.0
  %284 = vmatmul.mubr.f32.gmra.mrb[0].mxu0 %v102
  %v285 = vpop.f32.mrb[0].mxu0
  %v286 = vadd.f32 %v65, %v285
  %v287 = vpop.f32.mrb[0].mxu0
  %288 = vmatprep.mubr.f32.mxu0 0.0
  %289 = vmatmul.mubr.f32.gmra.mrb[0].mxu0 %v105
  %v290 = vpop.f32.mrb[0].mxu0
  %v291 = vadd.f32 %v65, %v290
  %v292 = vpop.f32.mrb[0].mxu0
  %293 = vmatprep.mubr.f32.mxu0 0.0
  %294 = vmatmul.mubr.f32.gmra.mrb[0].mxu0 %v108
  %v295 = vpop.f32.mrb[0].mxu0
  %v296 = vadd.f32 %v65, %v295
  %v297 = vpop.f32.mrb[0].mxu0
  %298 = vmatprep.mubr.f32.mxu0 0.0
  %299 = vmatmul.mubr.f32.gmra.mrb[0].mxu0 %v111
  %v300 = vpop.f32.mrb[0].mxu0
  %v301 = vadd.f32 %v65, %v300
  %v302 = vpop.f32.mrb[0].mxu0
  %303 = vmatprep.mubr.f32.mxu0 0.0
  %304 = vmatmul.mubr.f32.gmra.mrb[0].mxu0 %v114
  %v305 = vpop.f32.mrb[0].mxu0
  %v306 = vadd.f32 %v65, %v305
  %v307 = vpop.f32.mrb[0].mxu0
  %308 = vmatprep.mubr.f32.mxu0 0.0
  %309 = vmatmul.mubr.f32.gmra.mrb[0].mxu0 %v117
  %v310 = vpop.f32.mrb[0].mxu0
  %v311 = vadd.f32 %v65, %v310
  %v312 = vpop.f32.mrb[0].mxu0
  %313 = vmatprep.mubr.f32.mxu0 0.0
  %314 = vmatmul.mubr.f32.gmra.mrb[0].mxu0 %v120
  %v315 = vpop.f32.mrb[0].mxu0
  %v316 = vadd.f32 %v65, %v315
  %v317 = vpop.f32.mrb[0].mxu0
  %318 = vmatprep.mubr.f32.mxu0 0.0
  %319 = vmatmul.mubr.f32.gmra.mrb[0].mxu0 %v123
  %v320 = vpop.f32.mrb[0].mxu0
  %v321 = vadd.f32 %v65, %v320
  %v322 = vpop.f32.mrb[0].mxu0
  %323 = vmatprep.mubr.f32.mxu0 0.0
  %324 = vmatmul.mubr.f32.gmra.mrb[0].mxu0 %v126
  %v325 = vpop.f32.mrb[0].mxu0
  %v326 = vadd.f32 %v65, %v325
  %v327 = vpop.f32.mrb[0].mxu0
  %328 = vmatprep.mubr.f32.mxu0 0.0
  %329 = vmatmul.mubr.f32.gmra.mrb[0].mxu0 %v129
  %v330 = vpop.f32.mrb[0].mxu0
  %v331 = vadd.f32 %v65, %v330
  %v332 = vpop.f32.mrb[0].mxu0
  %333 = vmatprep.mubr.f32.mxu0 0.0
  %334 = vmatmul.mubr.f32.gmra.mrb[0].mxu0 %v132
  %v335 = vpop.f32.mrb[0].mxu0
  %v336 = vadd.f32 %v65, %v335
  %v337 = vpop.f32.mrb[0].mxu0
  %338 = vmatprep.mubr.f32.mxu0 0.0
  %339 = vmatmul.mubr.f32.gmra.mrb[0].mxu0 %v135
  %v340 = vpop.f32.mrb[0].mxu0
  %v341 = vadd.f32 %v65, %v340
  %v342 = vpop.f32.mrb[0].mxu0
  %343 = vmatprep.mubr.f32.mxu0 0.0
  %344 = vmatmul.mubr.f32.gmra.mrb[0].mxu0 %v138
  %v345 = vpop.f32.mrb[0].mxu0
  %v346 = vadd.f32 %v65, %v345
  %v347 = vpop.f32.mrb[0].mxu0
  %348 = vmatprep.mubr.f32.mxu0 0.0
  %349 = vmatmul.mubr.f32.gmra.mrb[0].mxu0 %v141
  %v350 = vpop.f32.mrb[0].mxu0
  %v351 = vadd.f32 %v65, %v350
  %v352 = vpop.f32.mrb[0].mxu0
  %353 = vmatprep.mubr.f32.mxu0 0.0
  %354 = vmatmul.mubr.f32.gmra.mrb[0].mxu0 %v144
  %v355 = vpop.f32.mrb[0].mxu0
  %v356 = vadd.f32 %v65, %v355
  %v357 = vpop.f32.mrb[0].mxu0
  %358 = vmatprep.mubr.f32.mxu0 0.0
  %359 = vmatmul.mubr.f32.gmra.mrb[0].mxu0 %v147
  %v360 = vpop.f32.mrb[0].mxu0
  %v361 = vadd.f32 %v65, %v360
  %v362 = vpop.f32.mrb[0].mxu0
  %363 = vmatprep.mubr.f32.mxu0 0.0
  %364 = vmatmul.mubr.f32.gmra.mrb[0].mxu0 %v150
  %v365 = vpop.f32.mrb[0].mxu0
  %v366 = vadd.f32 %v65, %v365
  %v367 = vpop.f32.mrb[0].mxu0
  %368 = vmatprep.mubr.f32.mxu0 0.0
  %369 = vmatmul.mubr.f32.gmra.mrb[0].mxu0 %v153
  %v370 = vpop.f32.mrb[0].mxu0
  %v371 = vadd.f32 %v65, %v370
  %v372 = vpop.f32.mrb[0].mxu0
  %373 = vmatprep.mubr.f32.mxu0 0.0
  %374 = vmatmul.mubr.f32.gmra.mrb[0].mxu0 %v156
  %v375 = vpop.f32.mrb[0].mxu0
  %v376 = vadd.f32 %v65, %v375
  %v377 = vpop.f32.mrb[0].mxu0
  %378 = vmatprep.mubr.f32.mxu0 0.0
  %379 = vmatmul.mubr.f32.gmra.mrb[0].mxu0 %v159
  %v380 = vpop.f32.mrb[0].mxu0
  %v381 = vadd.f32 %v65, %v380
  %v382 = vpop.f32.mrb[0].mxu0
  %383 = vmatprep.mubr.f32.mxu0 0.0
  %384 = vmatmul.mubr.f32.gmra.mrb[0].mxu0 %v162
  %v385 = vpop.f32.mrb[0].mxu0
  %v386 = vadd.f32 %v65, %v385
  %v387 = vpop.f32.mrb[0].mxu0
  %388 = vdwg.mxu0
  %v389 = vmax.f32 %v231, 0.0
  %v390 = vmax.f32 %v236, 0.0
  %v391 = vmax.f32 %v241, 0.0
  %v392 = vmax.f32 %v246, 0.0
  %v393 = vmax.f32 %v251, 0.0
  %v394 = vmax.f32 %v256, 0.0
  %v395 = vmax.f32 %v261, 0.0
  %v396 = vmax.f32 %v266, 0.0
  %v397 = vmax.f32 %v271, 0.0
  %v398 = vmax.f32 %v276, 0.0
  %v399 = vmax.f32 %v281, 0.0
  %v400 = vmax.f32 %v286, 0.0
  %v401 = vmax.f32 %v291, 0.0
  %v402 = vmax.f32 %v296, 0.0
  %v403 = vmax.f32 %v301, 0.0
  %v404 = vmax.f32 %v306, 0.0
  %v405 = vmax.f32 %v311, 0.0
  %v406 = vmax.f32 %v316, 0.0
  %v407 = vmax.f32 %v321, 0.0
  %v408 = vmax.f32 %v326, 0.0
  %v409 = vmax.f32 %v331, 0.0
  %v410 = vmax.f32 %v336, 0.0
  %v411 = vmax.f32 %v341, 0.0
  %v412 = vmax.f32 %v346, 0.0
  %v413 = vmax.f32 %v351, 0.0
  %v414 = vmax.f32 %v356, 0.0
  %v415 = vmax.f32 %v361, 0.0
  %v416 = vmax.f32 %v366, 0.0
  %v417 = vmax.f32 %v371, 0.0
  %v418 = vmax.f32 %v376, 0.0
  %v419 = vmax.f32 %v381, 0.0
  %v420 = vmax.f32 %v386, 0.0
  %v421 = vld [vmem:[%s3] sm:$0xff]
  %v422 = vld [vmem:[%s3 + $0x8] sm:$0xff]
  %v423 = vld [vmem:[%s3 + $0x10] sm:$0xff]
  %v424 = vld [vmem:[%s3 + $0x18] sm:$0xff]
  %v425 = vld [vmem:[%s3 + $0x20] sm:$0xff]
  %v426 = vld [vmem:[%s3 + $0x28] sm:$0xff]
  %v427 = vld [vmem:[%s3 + $0x30] sm:$0xff]
  %v428 = vld [vmem:[%s3 + $0x38] sm:$0xff]
  %v429 = vld [vmem:[%s3 + $0x40] sm:$0xff]
  %v430 = vld [vmem:[%s3 + $0x48] sm:$0xff]
  %v431 = vld [vmem:[%s3 + $0x50] sm:$0xff]
  %v432 = vld [vmem:[%s3 + $0x58] sm:$0xff]
  %v433 = vld [vmem:[%s3 + $0x60] sm:$0xff]
  %v434 = vld [vmem:[%s3 + $0x68] sm:$0xff]
  %v435 = vld [vmem:[%s3 + $0x70] sm:$0xff]
  %v436 = vld [vmem:[%s3 + $0x78] sm:$0xff]
  %v437 = vld [vmem:[%s4] sm:$0x1]
  %v439 = vlaneseq
  %v440 = vshrl.u32 %v439, 7
  %v441 = vsub.s32 0, %v440
  %v442 = vrot.slane %v437, %v441
  %444 = vmatprep.subr.mxu0 0.0
  %445 = vmatpush1.msra.mxu0 %v421
  %446 = vmatprep.subr.mxu0 0.0
  %447 = vmatpush1.msra.mxu0 %v422
  %448 = vmatprep.subr.mxu0 0.0
  %449 = vmatpush1.msra.mxu0 %v423
  %450 = vmatprep.subr.mxu0 0.0
  %451 = vmatpush1.msra.mxu0 %v424
  %452 = vmatprep.subr.mxu0 0.0
  %453 = vmatpush1.msra.mxu0 %v425
  %454 = vmatprep.subr.mxu0 0.0
  %455 = vmatpush1.msra.mxu0 %v426
  %456 = vmatprep.subr.mxu0 0.0
  %457 = vmatpush1.msra.mxu0 %v427
  %458 = vmatprep.subr.mxu0 0.0
  %459 = vmatpush1.msra.mxu0 %v428
  %460 = vmatprep.subr.mxu0 0.0
  %461 = vmatpush1.msra.mxu0 %v429
  %462 = vmatprep.subr.mxu0 0.0
  %463 = vmatpush1.msra.mxu0 %v430
  %464 = vmatprep.subr.mxu0 0.0
  %465 = vmatpush1.msra.mxu0 %v431
  %466 = vmatprep.subr.mxu0 0.0
  %467 = vmatpush1.msra.mxu0 %v432
  %468 = vmatprep.subr.mxu0 0.0
  %469 = vmatpush1.msra.mxu0 %v433
  %470 = vmatprep.subr.mxu0 0.0
  %471 = vmatpush1.msra.mxu0 %v434
  %472 = vmatprep.subr.mxu0 0.0
  %473 = vmatpush1.msra.mxu0 %v435
  %474 = vmatprep.subr.mxu0 0.0
  %475 = vmatpush1.msra.mxu0 %v436
  %476 = vmatprep.subr.mxu0 0.0
  %477 = vmatpush1.msra.mxu0 0.0
  %478 = vmatprep.subr.mxu0 0.0
  %479 = vmatpush1.msra.mxu0 0.0
  %480 = vmatprep.subr.mxu0 0.0
  %481 = vmatpush1.msra.mxu0 0.0
  %482 = vmatprep.subr.mxu0 0.0
  %483 = vmatpush1.msra.mxu0 0.0
  %484 = vmatprep.subr.mxu0 0.0
  %485 = vmatpush1.msra.mxu0 0.0
  %486 = vmatprep.subr.mxu0 0.0
  %487 = vmatpush1.msra.mxu0 0.0
  %488 = vmatprep.subr.mxu0 0.0
  %489 = vmatpush1.msra.mxu0 0.0
  %490 = vmatprep.subr.mxu0 0.0
  %491 = vmatpush1.msra.mxu0 0.0
  %492 = vmatprep.subr.mxu0 0.0
  %493 = vmatpush1.msra.mxu0 0.0
  %494 = vmatprep.subr.mxu0 0.0
  %495 = vmatpush1.msra.mxu0 0.0
  %496 = vmatprep.subr.mxu0 0.0
  %497 = vmatpush1.msra.mxu0 0.0
  %498 = vmatprep.subr.mxu0 0.0
  %499 = vmatpush1.msra.mxu0 0.0
  %500 = vmatprep.subr.mxu0 0.0
  %501 = vmatpush1.msra.mxu0 0.0
  %502 = vmatprep.subr.mxu0 0.0
  %503 = vmatpush1.msra.mxu0 0.0
  %504 = vmatprep.subr.mxu0 0.0
  %505 = vmatpush1.msra.mxu0 0.0
  %506 = vmatprep.subr.mxu0 0.0
  %507 = vmatpush1.msra.mxu0 0.0
  %508 = vmatprep.mubr.f32.mxu0 0.0
  %509 = vmatmul.mubr.f32.gmra.mrb[0].mxu0 %v389
  %v510 = vpop.f32.mrb[0].mxu0
  %v511 = vadd.f32 %v442, %v510
  %v512 = vpop.f32.mrb[0].mxu0
  %513 = vmatprep.mubr.f32.mxu0 0.0
  %514 = vmatmul.mubr.f32.gmra.mrb[0].mxu0 %v390
  %v515 = vpop.f32.mrb[0].mxu0
  %v516 = vadd.f32 %v442, %v515
  %v517 = vpop.f32.mrb[0].mxu0
  %518 = vmatprep.mubr.f32.mxu0 0.0
  %519 = vmatmul.mubr.f32.gmra.mrb[0].mxu0 %v391
  %v520 = vpop.f32.mrb[0].mxu0
  %v521 = vadd.f32 %v442, %v520
  %v522 = vpop.f32.mrb[0].mxu0
  %523 = vmatprep.mubr.f32.mxu0 0.0
  %524 = vmatmul.mubr.f32.gmra.mrb[0].mxu0 %v392
  %v525 = vpop.f32.mrb[0].mxu0
  %v526 = vadd.f32 %v442, %v525
  %v527 = vpop.f32.mrb[0].mxu0
  %528 = vmatprep.mubr.f32.mxu0 0.0
  %529 = vmatmul.mubr.f32.gmra.mrb[0].mxu0 %v393
  %v530 = vpop.f32.mrb[0].mxu0
  %v531 = vadd.f32 %v442, %v530
  %v532 = vpop.f32.mrb[0].mxu0
  %533 = vmatprep.mubr.f32.mxu0 0.0
  %534 = vmatmul.mubr.f32.gmra.mrb[0].mxu0 %v394
  %v535 = vpop.f32.mrb[0].mxu0
  %v536 = vadd.f32 %v442, %v535
  %v537 = vpop.f32.mrb[0].mxu0
  %538 = vmatprep.mubr.f32.mxu0 0.0
  %539 = vmatmul.mubr.f32.gmra.mrb[0].mxu0 %v395
  %v540 = vpop.f32.mrb[0].mxu0
  %v541 = vadd.f32 %v442, %v540
  %v542 = vpop.f32.mrb[0].mxu0
  %543 = vmatprep.mubr.f32.mxu0 0.0
  %544 = vmatmul.mubr.f32.gmra.mrb[0].mxu0 %v396
  %v545 = vpop.f32.mrb[0].mxu0
  %v546 = vadd.f32 %v442, %v545
  %v547 = vpop.f32.mrb[0].mxu0
  %548 = vmatprep.mubr.f32.mxu0 0.0
  %549 = vmatmul.mubr.f32.gmra.mrb[0].mxu0 %v397
  %v550 = vpop.f32.mrb[0].mxu0
  %v551 = vadd.f32 %v442, %v550
  %v552 = vpop.f32.mrb[0].mxu0
  %553 = vmatprep.mubr.f32.mxu0 0.0
  %554 = vmatmul.mubr.f32.gmra.mrb[0].mxu0 %v398
  %v555 = vpop.f32.mrb[0].mxu0
  %v556 = vadd.f32 %v442, %v555
  %v557 = vpop.f32.mrb[0].mxu0
  %558 = vmatprep.mubr.f32.mxu0 0.0
  %559 = vmatmul.mubr.f32.gmra.mrb[0].mxu0 %v399
  %v560 = vpop.f32.mrb[0].mxu0
  %v561 = vadd.f32 %v442, %v560
  %v562 = vpop.f32.mrb[0].mxu0
  %563 = vmatprep.mubr.f32.mxu0 0.0
  %564 = vmatmul.mubr.f32.gmra.mrb[0].mxu0 %v400
  %v565 = vpop.f32.mrb[0].mxu0
  %v566 = vadd.f32 %v442, %v565
  %v567 = vpop.f32.mrb[0].mxu0
  %568 = vmatprep.mubr.f32.mxu0 0.0
  %569 = vmatmul.mubr.f32.gmra.mrb[0].mxu0 %v401
  %v570 = vpop.f32.mrb[0].mxu0
  %v571 = vadd.f32 %v442, %v570
  %v572 = vpop.f32.mrb[0].mxu0
  %573 = vmatprep.mubr.f32.mxu0 0.0
  %574 = vmatmul.mubr.f32.gmra.mrb[0].mxu0 %v402
  %v575 = vpop.f32.mrb[0].mxu0
  %v576 = vadd.f32 %v442, %v575
  %v577 = vpop.f32.mrb[0].mxu0
  %578 = vmatprep.mubr.f32.mxu0 0.0
  %579 = vmatmul.mubr.f32.gmra.mrb[0].mxu0 %v403
  %v580 = vpop.f32.mrb[0].mxu0
  %v581 = vadd.f32 %v442, %v580
  %v582 = vpop.f32.mrb[0].mxu0
  %583 = vmatprep.mubr.f32.mxu0 0.0
  %584 = vmatmul.mubr.f32.gmra.mrb[0].mxu0 %v404
  %v585 = vpop.f32.mrb[0].mxu0
  %v586 = vadd.f32 %v442, %v585
  %v587 = vpop.f32.mrb[0].mxu0
  %588 = vmatprep.mubr.f32.mxu0 0.0
  %589 = vmatmul.mubr.f32.gmra.mrb[0].mxu0 %v405
  %v590 = vpop.f32.mrb[0].mxu0
  %v591 = vadd.f32 %v442, %v590
  %v592 = vpop.f32.mrb[0].mxu0
  %593 = vmatprep.mubr.f32.mxu0 0.0
  %594 = vmatmul.mubr.f32.gmra.mrb[0].mxu0 %v406
  %v595 = vpop.f32.mrb[0].mxu0
  %v596 = vadd.f32 %v442, %v595
  %v597 = vpop.f32.mrb[0].mxu0
  %598 = vmatprep.mubr.f32.mxu0 0.0
  %599 = vmatmul.mubr.f32.gmra.mrb[0].mxu0 %v407
  %v600 = vpop.f32.mrb[0].mxu0
  %v601 = vadd.f32 %v442, %v600
  %v602 = vpop.f32.mrb[0].mxu0
  %603 = vmatprep.mubr.f32.mxu0 0.0
  %604 = vmatmul.mubr.f32.gmra.mrb[0].mxu0 %v408
  %v605 = vpop.f32.mrb[0].mxu0
  %v606 = vadd.f32 %v442, %v605
  %v607 = vpop.f32.mrb[0].mxu0
  %608 = vmatprep.mubr.f32.mxu0 0.0
  %609 = vmatmul.mubr.f32.gmra.mrb[0].mxu0 %v409
  %v610 = vpop.f32.mrb[0].mxu0
  %v611 = vadd.f32 %v442, %v610
  %v612 = vpop.f32.mrb[0].mxu0
  %613 = vmatprep.mubr.f32.mxu0 0.0
  %614 = vmatmul.mubr.f32.gmra.mrb[0].mxu0 %v410
  %v615 = vpop.f32.mrb[0].mxu0
  %v616 = vadd.f32 %v442, %v615
  %v617 = vpop.f32.mrb[0].mxu0
  %618 = vmatprep.mubr.f32.mxu0 0.0
  %619 = vmatmul.mubr.f32.gmra.mrb[0].mxu0 %v411
  %v620 = vpop.f32.mrb[0].mxu0
  %v621 = vadd.f32 %v442, %v620
  %v622 = vpop.f32.mrb[0].mxu0
  %623 = vmatprep.mubr.f32.mxu0 0.0
  %624 = vmatmul.mubr.f32.gmra.mrb[0].mxu0 %v412
  %v625 = vpop.f32.mrb[0].mxu0
  %v626 = vadd.f32 %v442, %v625
  %v627 = vpop.f32.mrb[0].mxu0
  %628 = vmatprep.mubr.f32.mxu0 0.0
  %629 = vmatmul.mubr.f32.gmra.mrb[0].mxu0 %v413
  %v630 = vpop.f32.mrb[0].mxu0
  %v631 = vadd.f32 %v442, %v630
  %v632 = vpop.f32.mrb[0].mxu0
  %633 = vmatprep.mubr.f32.mxu0 0.0
  %634 = vmatmul.mubr.f32.gmra.mrb[0].mxu0 %v414
  %v635 = vpop.f32.mrb[0].mxu0
  %v636 = vadd.f32 %v442, %v635
  %v637 = vpop.f32.mrb[0].mxu0
  %638 = vmatprep.mubr.f32.mxu0 0.0
  %639 = vmatmul.mubr.f32.gmra.mrb[0].mxu0 %v415
  %v640 = vpop.f32.mrb[0].mxu0
  %v641 = vadd.f32 %v442, %v640
  %v642 = vpop.f32.mrb[0].mxu0
  %643 = vmatprep.mubr.f32.mxu0 0.0
  %644 = vmatmul.mubr.f32.gmra.mrb[0].mxu0 %v416
  %v645 = vpop.f32.mrb[0].mxu0
  %v646 = vadd.f32 %v442, %v645
  %v647 = vpop.f32.mrb[0].mxu0
  %648 = vmatprep.mubr.f32.mxu0 0.0
  %649 = vmatmul.mubr.f32.gmra.mrb[0].mxu0 %v417
  %v650 = vpop.f32.mrb[0].mxu0
  %v651 = vadd.f32 %v442, %v650
  %v652 = vpop.f32.mrb[0].mxu0
  %653 = vmatprep.mubr.f32.mxu0 0.0
  %654 = vmatmul.mubr.f32.gmra.mrb[0].mxu0 %v418
  %v655 = vpop.f32.mrb[0].mxu0
  %v656 = vadd.f32 %v442, %v655
  %v657 = vpop.f32.mrb[0].mxu0
  %658 = vmatprep.mubr.f32.mxu0 0.0
  %659 = vmatmul.mubr.f32.gmra.mrb[0].mxu0 %v419
  %v660 = vpop.f32.mrb[0].mxu0
  %v661 = vadd.f32 %v442, %v660
  %v662 = vpop.f32.mrb[0].mxu0
  %663 = vmatprep.mubr.f32.mxu0 0.0
  %664 = vmatmul.mubr.f32.gmra.mrb[0].mxu0 %v420
  %v665 = vpop.f32.mrb[0].mxu0
  %v666 = vadd.f32 %v442, %v665
  %v667 = vpop.f32.mrb[0].mxu0
  %668 = vdwg.mxu0
  %v669 = vmax.f32 %v511, 0.0
  %v670 = vmax.f32 %v516, 0.0
  %v671 = vmax.f32 %v521, 0.0
  %v672 = vmax.f32 %v526, 0.0
  %v673 = vmax.f32 %v531, 0.0
  %v674 = vmax.f32 %v536, 0.0
  %v675 = vmax.f32 %v541, 0.0
  %v676 = vmax.f32 %v546, 0.0
  %v677 = vmax.f32 %v551, 0.0
  %v678 = vmax.f32 %v556, 0.0
  %v679 = vmax.f32 %v561, 0.0
  %v680 = vmax.f32 %v566, 0.0
  %v681 = vmax.f32 %v571, 0.0
  %v682 = vmax.f32 %v576, 0.0
  %v683 = vmax.f32 %v581, 0.0
  %v684 = vmax.f32 %v586, 0.0
  %v685 = vmax.f32 %v591, 0.0
  %v686 = vmax.f32 %v596, 0.0
  %v687 = vmax.f32 %v601, 0.0
  %v688 = vmax.f32 %v606, 0.0
  %v689 = vmax.f32 %v611, 0.0
  %v690 = vmax.f32 %v616, 0.0
  %v691 = vmax.f32 %v621, 0.0
  %v692 = vmax.f32 %v626, 0.0
  %v693 = vmax.f32 %v631, 0.0
  %v694 = vmax.f32 %v636, 0.0
  %v695 = vmax.f32 %v641, 0.0
  %v696 = vmax.f32 %v646, 0.0
  %v697 = vmax.f32 %v651, 0.0
  %v698 = vmax.f32 %v656, 0.0
  %v699 = vmax.f32 %v661, 0.0
  %v700 = vmax.f32 %v666, 0.0
  %v701 = vld [vmem:[%s5] sm:$0xff]
  %v702 = vld [vmem:[%s5 + $0x8] sm:$0xff]
  %v703 = vld [vmem:[%s5 + $0x10] sm:$0xff]
  %v704 = vld [vmem:[%s5 + $0x18] sm:$0xff]
  %v705 = vld [vmem:[%s5 + $0x20] sm:$0xff]
  %v706 = vld [vmem:[%s5 + $0x28] sm:$0xff]
  %v707 = vld [vmem:[%s5 + $0x30] sm:$0xff]
  %v708 = vld [vmem:[%s5 + $0x38] sm:$0xff]
  %v709 = vld [vmem:[%s5 + $0x40] sm:$0xff]
  %v710 = vld [vmem:[%s5 + $0x48] sm:$0xff]
  %v711 = vld [vmem:[%s5 + $0x50] sm:$0xff]
  %v712 = vld [vmem:[%s5 + $0x58] sm:$0xff]
  %v713 = vld [vmem:[%s5 + $0x60] sm:$0xff]
  %v714 = vld [vmem:[%s5 + $0x68] sm:$0xff]
  %v715 = vld [vmem:[%s5 + $0x70] sm:$0xff]
  %v716 = vld [vmem:[%s5 + $0x78] sm:$0xff]
  %v717 = vld [vmem:[%s6] sm:$0x1]
  %v719 = vlaneseq
  %v720 = vshrl.u32 %v719, 7
  %v721 = vsub.s32 0, %v720
  %v722 = vrot.slane %v717, %v721
  %724 = vmatprep.subr.mxu0 0.0
  %725 = vmatpush1.msra.mxu0 %v701
  %726 = vmatprep.subr.mxu0 0.0
  %727 = vmatpush1.msra.mxu0 %v702
  %728 = vmatprep.subr.mxu0 0.0
  %729 = vmatpush1.msra.mxu0 %v703
  %730 = vmatprep.subr.mxu0 0.0
  %731 = vmatpush1.msra.mxu0 %v704
  %732 = vmatprep.subr.mxu0 0.0
  %733 = vmatpush1.msra.mxu0 %v705
  %734 = vmatprep.subr.mxu0 0.0
  %735 = vmatpush1.msra.mxu0 %v706
  %736 = vmatprep.subr.mxu0 0.0
  %737 = vmatpush1.msra.mxu0 %v707
  %738 = vmatprep.subr.mxu0 0.0
  %739 = vmatpush1.msra.mxu0 %v708
  %740 = vmatprep.subr.mxu0 0.0
  %741 = vmatpush1.msra.mxu0 %v709
  %742 = vmatprep.subr.mxu0 0.0
  %743 = vmatpush1.msra.mxu0 %v710
  %744 = vmatprep.subr.mxu0 0.0
  %745 = vmatpush1.msra.mxu0 %v711
  %746 = vmatprep.subr.mxu0 0.0
  %747 = vmatpush1.msra.mxu0 %v712
  %748 = vmatprep.subr.mxu0 0.0
  %749 = vmatpush1.msra.mxu0 %v713
  %750 = vmatprep.subr.mxu0 0.0
  %751 = vmatpush1.msra.mxu0 %v714
  %752 = vmatprep.subr.mxu0 0.0
  %753 = vmatpush1.msra.mxu0 %v715
  %754 = vmatprep.subr.mxu0 0.0
  %755 = vmatpush1.msra.mxu0 %v716
  %756 = vmatprep.subr.mxu0 0.0
  %757 = vmatpush1.msra.mxu0 0.0
  %758 = vmatprep.subr.mxu0 0.0
  %759 = vmatpush1.msra.mxu0 0.0
  %760 = vmatprep.subr.mxu0 0.0
  %761 = vmatpush1.msra.mxu0 0.0
  %762 = vmatprep.subr.mxu0 0.0
  %763 = vmatpush1.msra.mxu0 0.0
  %764 = vmatprep.subr.mxu0 0.0
  %765 = vmatpush1.msra.mxu0 0.0
  %766 = vmatprep.subr.mxu0 0.0
  %767 = vmatpush1.msra.mxu0 0.0
  %768 = vmatprep.subr.mxu0 0.0
  %769 = vmatpush1.msra.mxu0 0.0
  %770 = vmatprep.subr.mxu0 0.0
  %771 = vmatpush1.msra.mxu0 0.0
  %772 = vmatprep.subr.mxu0 0.0
  %773 = vmatpush1.msra.mxu0 0.0
  %774 = vmatprep.subr.mxu0 0.0
  %775 = vmatpush1.msra.mxu0 0.0
  %776 = vmatprep.subr.mxu0 0.0
  %777 = vmatpush1.msra.mxu0 0.0
  %778 = vmatprep.subr.mxu0 0.0
  %779 = vmatpush1.msra.mxu0 0.0
  %780 = vmatprep.subr.mxu0 0.0
  %781 = vmatpush1.msra.mxu0 0.0
  %782 = vmatprep.subr.mxu0 0.0
  %783 = vmatpush1.msra.mxu0 0.0
  %784 = vmatprep.subr.mxu0 0.0
  %785 = vmatpush1.msra.mxu0 0.0
  %786 = vmatprep.subr.mxu0 0.0
  %787 = vmatpush1.msra.mxu0 0.0
  %788 = vmatprep.mubr.f32.mxu0 0.0
  %789 = vmatmul.mubr.f32.gmra.mrb[0].mxu0 %v669
  %v790 = vpop.f32.mrb[0].mxu0
  %v791 = vadd.f32 %v722, %v790
  %v792 = vpop.f32.mrb[0].mxu0
  %793 = vmatprep.mubr.f32.mxu0 0.0
  %794 = vmatmul.mubr.f32.gmra.mrb[0].mxu0 %v670
  %v795 = vpop.f32.mrb[0].mxu0
  %v796 = vadd.f32 %v722, %v795
  %v797 = vpop.f32.mrb[0].mxu0
  %798 = vmatprep.mubr.f32.mxu0 0.0
  %799 = vmatmul.mubr.f32.gmra.mrb[0].mxu0 %v671
  %v800 = vpop.f32.mrb[0].mxu0
  %v801 = vadd.f32 %v722, %v800
  %v802 = vpop.f32.mrb[0].mxu0
  %803 = vmatprep.mubr.f32.mxu0 0.0
  %804 = vmatmul.mubr.f32.gmra.mrb[0].mxu0 %v672
  %v805 = vpop.f32.mrb[0].mxu0
  %v806 = vadd.f32 %v722, %v805
  %v807 = vpop.f32.mrb[0].mxu0
  %808 = vmatprep.mubr.f32.mxu0 0.0
  %809 = vmatmul.mubr.f32.gmra.mrb[0].mxu0 %v673
  %v810 = vpop.f32.mrb[0].mxu0
  %v811 = vadd.f32 %v722, %v810
  %v812 = vpop.f32.mrb[0].mxu0
  %813 = vmatprep.mubr.f32.mxu0 0.0
  %814 = vmatmul.mubr.f32.gmra.mrb[0].mxu0 %v674
  %v815 = vpop.f32.mrb[0].mxu0
  %v816 = vadd.f32 %v722, %v815
  %v817 = vpop.f32.mrb[0].mxu0
  %818 = vmatprep.mubr.f32.mxu0 0.0
  %819 = vmatmul.mubr.f32.gmra.mrb[0].mxu0 %v675
  %v820 = vpop.f32.mrb[0].mxu0
  %v821 = vadd.f32 %v722, %v820
  %v822 = vpop.f32.mrb[0].mxu0
  %823 = vmatprep.mubr.f32.mxu0 0.0
  %824 = vmatmul.mubr.f32.gmra.mrb[0].mxu0 %v676
  %v825 = vpop.f32.mrb[0].mxu0
  %v826 = vadd.f32 %v722, %v825
  %v827 = vpop.f32.mrb[0].mxu0
  %828 = vmatprep.mubr.f32.mxu0 0.0
  %829 = vmatmul.mubr.f32.gmra.mrb[0].mxu0 %v677
  %v830 = vpop.f32.mrb[0].mxu0
  %v831 = vadd.f32 %v722, %v830
  %v832 = vpop.f32.mrb[0].mxu0
  %833 = vmatprep.mubr.f32.mxu0 0.0
  %834 = vmatmul.mubr.f32.gmra.mrb[0].mxu0 %v678
  %v835 = vpop.f32.mrb[0].mxu0
  %v836 = vadd.f32 %v722, %v835
  %v837 = vpop.f32.mrb[0].mxu0
  %838 = vmatprep.mubr.f32.mxu0 0.0
  %839 = vmatmul.mubr.f32.gmra.mrb[0].mxu0 %v679
  %v840 = vpop.f32.mrb[0].mxu0
  %v841 = vadd.f32 %v722, %v840
  %v842 = vpop.f32.mrb[0].mxu0
  %843 = vmatprep.mubr.f32.mxu0 0.0
  %844 = vmatmul.mubr.f32.gmra.mrb[0].mxu0 %v680
  %v845 = vpop.f32.mrb[0].mxu0
  %v846 = vadd.f32 %v722, %v845
  %v847 = vpop.f32.mrb[0].mxu0
  %848 = vmatprep.mubr.f32.mxu0 0.0
  %849 = vmatmul.mubr.f32.gmra.mrb[0].mxu0 %v681
  %v850 = vpop.f32.mrb[0].mxu0
  %v851 = vadd.f32 %v722, %v850
  %v852 = vpop.f32.mrb[0].mxu0
  %853 = vmatprep.mubr.f32.mxu0 0.0
  %854 = vmatmul.mubr.f32.gmra.mrb[0].mxu0 %v682
  %v855 = vpop.f32.mrb[0].mxu0
  %v856 = vadd.f32 %v722, %v855
  %v857 = vpop.f32.mrb[0].mxu0
  %858 = vmatprep.mubr.f32.mxu0 0.0
  %859 = vmatmul.mubr.f32.gmra.mrb[0].mxu0 %v683
  %v860 = vpop.f32.mrb[0].mxu0
  %v861 = vadd.f32 %v722, %v860
  %v862 = vpop.f32.mrb[0].mxu0
  %863 = vmatprep.mubr.f32.mxu0 0.0
  %864 = vmatmul.mubr.f32.gmra.mrb[0].mxu0 %v684
  %v865 = vpop.f32.mrb[0].mxu0
  %v866 = vadd.f32 %v722, %v865
  %v867 = vpop.f32.mrb[0].mxu0
  %868 = vmatprep.mubr.f32.mxu0 0.0
  %869 = vmatmul.mubr.f32.gmra.mrb[0].mxu0 %v685
  %v870 = vpop.f32.mrb[0].mxu0
  %v871 = vadd.f32 %v722, %v870
  %v872 = vpop.f32.mrb[0].mxu0
  %873 = vmatprep.mubr.f32.mxu0 0.0
  %874 = vmatmul.mubr.f32.gmra.mrb[0].mxu0 %v686
  %v875 = vpop.f32.mrb[0].mxu0
  %v876 = vadd.f32 %v722, %v875
  %v877 = vpop.f32.mrb[0].mxu0
  %878 = vmatprep.mubr.f32.mxu0 0.0
  %879 = vmatmul.mubr.f32.gmra.mrb[0].mxu0 %v687
  %v880 = vpop.f32.mrb[0].mxu0
  %v881 = vadd.f32 %v722, %v880
  %v882 = vpop.f32.mrb[0].mxu0
  %883 = vmatprep.mubr.f32.mxu0 0.0
  %884 = vmatmul.mubr.f32.gmra.mrb[0].mxu0 %v688
  %v885 = vpop.f32.mrb[0].mxu0
  %v886 = vadd.f32 %v722, %v885
  %v887 = vpop.f32.mrb[0].mxu0
  %888 = vmatprep.mubr.f32.mxu0 0.0
  %889 = vmatmul.mubr.f32.gmra.mrb[0].mxu0 %v689
  %v890 = vpop.f32.mrb[0].mxu0
  %v891 = vadd.f32 %v722, %v890
  %v892 = vpop.f32.mrb[0].mxu0
  %893 = vmatprep.mubr.f32.mxu0 0.0
  %894 = vmatmul.mubr.f32.gmra.mrb[0].mxu0 %v690
  %v895 = vpop.f32.mrb[0].mxu0
  %v896 = vadd.f32 %v722, %v895
  %v897 = vpop.f32.mrb[0].mxu0
  %898 = vmatprep.mubr.f32.mxu0 0.0
  %899 = vmatmul.mubr.f32.gmra.mrb[0].mxu0 %v691
  %v900 = vpop.f32.mrb[0].mxu0
  %v901 = vadd.f32 %v722, %v900
  %v902 = vpop.f32.mrb[0].mxu0
  %903 = vmatprep.mubr.f32.mxu0 0.0
  %904 = vmatmul.mubr.f32.gmra.mrb[0].mxu0 %v692
  %v905 = vpop.f32.mrb[0].mxu0
  %v906 = vadd.f32 %v722, %v905
  %v907 = vpop.f32.mrb[0].mxu0
  %908 = vmatprep.mubr.f32.mxu0 0.0
  %909 = vmatmul.mubr.f32.gmra.mrb[0].mxu0 %v693
  %v910 = vpop.f32.mrb[0].mxu0
  %v911 = vadd.f32 %v722, %v910
  %v912 = vpop.f32.mrb[0].mxu0
  %913 = vmatprep.mubr.f32.mxu0 0.0
  %914 = vmatmul.mubr.f32.gmra.mrb[0].mxu0 %v694
  %v915 = vpop.f32.mrb[0].mxu0
  %v916 = vadd.f32 %v722, %v915
  %v917 = vpop.f32.mrb[0].mxu0
  %918 = vmatprep.mubr.f32.mxu0 0.0
  %919 = vmatmul.mubr.f32.gmra.mrb[0].mxu0 %v695
  %v920 = vpop.f32.mrb[0].mxu0
  %v921 = vadd.f32 %v722, %v920
  %v922 = vpop.f32.mrb[0].mxu0
  %923 = vmatprep.mubr.f32.mxu0 0.0
  %924 = vmatmul.mubr.f32.gmra.mrb[0].mxu0 %v696
  %v925 = vpop.f32.mrb[0].mxu0
  %v926 = vadd.f32 %v722, %v925
  %v927 = vpop.f32.mrb[0].mxu0
  %928 = vmatprep.mubr.f32.mxu0 0.0
  %929 = vmatmul.mubr.f32.gmra.mrb[0].mxu0 %v697
  %v930 = vpop.f32.mrb[0].mxu0
  %v931 = vadd.f32 %v722, %v930
  %v932 = vpop.f32.mrb[0].mxu0
  %933 = vmatprep.mubr.f32.mxu0 0.0
  %934 = vmatmul.mubr.f32.gmra.mrb[0].mxu0 %v698
  %v935 = vpop.f32.mrb[0].mxu0
  %v936 = vadd.f32 %v722, %v935
  %v937 = vpop.f32.mrb[0].mxu0
  %938 = vmatprep.mubr.f32.mxu0 0.0
  %939 = vmatmul.mubr.f32.gmra.mrb[0].mxu0 %v699
  %v940 = vpop.f32.mrb[0].mxu0
  %v941 = vadd.f32 %v722, %v940
  %v942 = vpop.f32.mrb[0].mxu0
  %943 = vmatprep.mubr.f32.mxu0 0.0
  %944 = vmatmul.mubr.f32.gmra.mrb[0].mxu0 %v700
  %v945 = vpop.f32.mrb[0].mxu0
  %v946 = vadd.f32 %v722, %v945
  %v947 = vpop.f32.mrb[0].mxu0
  %948 = vdwg.mxu0
  %v949 = vmul.f32 %v791, %v791
  %v950 = vmul.f32 %v796, %v796
  %v951 = vmul.f32 %v801, %v801
  %v952 = vmul.f32 %v806, %v806
  %v953 = vmul.f32 %v811, %v811
  %v954 = vmul.f32 %v816, %v816
  %v955 = vmul.f32 %v821, %v821
  %v956 = vmul.f32 %v826, %v826
  %v957 = vmul.f32 %v831, %v831
  %v958 = vmul.f32 %v836, %v836
  %v959 = vmul.f32 %v841, %v841
  %v960 = vmul.f32 %v846, %v846
  %v961 = vmul.f32 %v851, %v851
  %v962 = vmul.f32 %v856, %v856
  %v963 = vmul.f32 %v861, %v861
  %v964 = vmul.f32 %v866, %v866
  %v965 = vmul.f32 %v871, %v871
  %v966 = vmul.f32 %v876, %v876
  %v967 = vmul.f32 %v881, %v881
  %v968 = vmul.f32 %v886, %v886
  %v969 = vmul.f32 %v891, %v891
  %v970 = vmul.f32 %v896, %v896
  %v971 = vmul.f32 %v901, %v901
  %v972 = vmul.f32 %v906, %v906
  %v973 = vmul.f32 %v911, %v911
  %v974 = vmul.f32 %v916, %v916
  %v975 = vmul.f32 %v921, %v921
  %v976 = vmul.f32 %v926, %v926
  %v977 = vmul.f32 %v931, %v931
  %v978 = vmul.f32 %v936, %v936
  %v979 = vmul.f32 %v941, %v941
  %v980 = vmul.f32 %v946, %v946
  %981 = vadd.xlane.f32.xlu0 %v949
  %v982 = vpop.xlane.xlu0 %981
  %983 = vadd.xlane.f32.xlu0 %v950
  %v984 = vpop.xlane.xlu0 %983
  %985 = vadd.xlane.f32.xlu0 %v951
  %v986 = vpop.xlane.xlu0 %985
  %987 = vadd.xlane.f32.xlu0 %v952
  %v988 = vpop.xlane.xlu0 %987
  %989 = vadd.xlane.f32.xlu0 %v953
  %v990 = vpop.xlane.xlu0 %989
  %991 = vadd.xlane.f32.xlu0 %v954
  %v992 = vpop.xlane.xlu0 %991
  %993 = vadd.xlane.f32.xlu0 %v955
  %v994 = vpop.xlane.xlu0 %993
  %995 = vadd.xlane.f32.xlu0 %v956
  %v996 = vpop.xlane.xlu0 %995
  %997 = vadd.xlane.f32.xlu0 %v957
  %v998 = vpop.xlane.xlu0 %997
  %999 = vadd.xlane.f32.xlu0 %v958
  %v1000 = vpop.xlane.xlu0 %999
  %1001 = vadd.xlane.f32.xlu0 %v959
  %v1002 = vpop.xlane.xlu0 %1001
  %1003 = vadd.xlane.f32.xlu0 %v960
  %v1004 = vpop.xlane.xlu0 %1003
  %1005 = vadd.xlane.f32.xlu0 %v961
  %v1006 = vpop.xlane.xlu0 %1005
  %1007 = vadd.xlane.f32.xlu0 %v962
  %v1008 = vpop.xlane.xlu0 %1007
  %1009 = vadd.xlane.f32.xlu0 %v963
  %v1010 = vpop.xlane.xlu0 %1009
  %1011 = vadd.xlane.f32.xlu0 %v964
  %v1012 = vpop.xlane.xlu0 %1011
  %1013 = vadd.xlane.f32.xlu0 %v965
  %v1014 = vpop.xlane.xlu0 %1013
  %1015 = vadd.xlane.f32.xlu0 %v966
  %v1016 = vpop.xlane.xlu0 %1015
  %1017 = vadd.xlane.f32.xlu0 %v967
  %v1018 = vpop.xlane.xlu0 %1017
  %1019 = vadd.xlane.f32.xlu0 %v968
  %v1020 = vpop.xlane.xlu0 %1019
  %1021 = vadd.xlane.f32.xlu0 %v969
  %v1022 = vpop.xlane.xlu0 %1021
  %1023 = vadd.xlane.f32.xlu0 %v970
  %v1024 = vpop.xlane.xlu0 %1023
  %1025 = vadd.xlane.f32.xlu0 %v971
  %v1026 = vpop.xlane.xlu0 %1025
  %1027 = vadd.xlane.f32.xlu0 %v972
  %v1028 = vpop.xlane.xlu0 %1027
  %1029 = vadd.xlane.f32.xlu0 %v973
  %v1030 = vpop.xlane.xlu0 %1029
  %1031 = vadd.xlane.f32.xlu0 %v974
  %v1032 = vpop.xlane.xlu0 %1031
  %1033 = vadd.xlane.f32.xlu0 %v975
  %v1034 = vpop.xlane.xlu0 %1033
  %1035 = vadd.xlane.f32.xlu0 %v976
  %v1036 = vpop.xlane.xlu0 %1035
  %1037 = vadd.xlane.f32.xlu0 %v977
  %v1038 = vpop.xlane.xlu0 %1037
  %1039 = vadd.xlane.f32.xlu0 %v978
  %v1040 = vpop.xlane.xlu0 %1039
  %1041 = vadd.xlane.f32.xlu0 %v979
  %v1042 = vpop.xlane.xlu0 %1041
  %1043 = vadd.xlane.f32.xlu0 %v980
  %v1044 = vpop.xlane.xlu0 %1043
  %v1045 = vmax.f32 %v982, 1e-24
  %v1046 = vmax.f32 %v984, 1e-24
  %v1047 = vmax.f32 %v986, 1e-24
  %v1048 = vmax.f32 %v988, 1e-24
  %v1049 = vmax.f32 %v990, 1e-24
  %v1050 = vmax.f32 %v992, 1e-24
  %v1051 = vmax.f32 %v994, 1e-24
  %v1052 = vmax.f32 %v996, 1e-24
  %v1053 = vmax.f32 %v998, 1e-24
  %v1054 = vmax.f32 %v1000, 1e-24
  %v1055 = vmax.f32 %v1002, 1e-24
  %v1056 = vmax.f32 %v1004, 1e-24
  %v1057 = vmax.f32 %v1006, 1e-24
  %v1058 = vmax.f32 %v1008, 1e-24
  %v1059 = vmax.f32 %v1010, 1e-24
  %v1060 = vmax.f32 %v1012, 1e-24
  %v1061 = vmax.f32 %v1014, 1e-24
  %v1062 = vmax.f32 %v1016, 1e-24
  %v1063 = vmax.f32 %v1018, 1e-24
  %v1064 = vmax.f32 %v1020, 1e-24
  %v1065 = vmax.f32 %v1022, 1e-24
  %v1066 = vmax.f32 %v1024, 1e-24
  %v1067 = vmax.f32 %v1026, 1e-24
  %v1068 = vmax.f32 %v1028, 1e-24
  %v1069 = vmax.f32 %v1030, 1e-24
  %v1070 = vmax.f32 %v1032, 1e-24
  %v1071 = vmax.f32 %v1034, 1e-24
  %v1072 = vmax.f32 %v1036, 1e-24
  %v1073 = vmax.f32 %v1038, 1e-24
  %v1074 = vmax.f32 %v1040, 1e-24
  %v1075 = vmax.f32 %v1042, 1e-24
  %v1076 = vmax.f32 %v1044, 1e-24
  %v1077 = vrsqrt.pop %v1045
  %v1078 = vrsqrt.pop %v1046
  %v1079 = vrsqrt.pop %v1047
  %v1080 = vrsqrt.pop %v1048
  %v1081 = vrsqrt.pop %v1049
  %v1082 = vrsqrt.pop %v1050
  %v1083 = vrsqrt.pop %v1051
  %v1084 = vrsqrt.pop %v1052
  %v1085 = vrsqrt.pop %v1053
  %v1086 = vrsqrt.pop %v1054
  %v1087 = vrsqrt.pop %v1055
  %v1088 = vrsqrt.pop %v1056
  %v1089 = vrsqrt.pop %v1057
  %v1090 = vrsqrt.pop %v1058
  %v1091 = vrsqrt.pop %v1059
  %v1092 = vrsqrt.pop %v1060
  %v1093 = vrsqrt.pop %v1061
  %v1094 = vrsqrt.pop %v1062
  %v1095 = vrsqrt.pop %v1063
  %v1096 = vrsqrt.pop %v1064
  %v1097 = vrsqrt.pop %v1065
  %v1098 = vrsqrt.pop %v1066
  %v1099 = vrsqrt.pop %v1067
  %v1100 = vrsqrt.pop %v1068
  %v1101 = vrsqrt.pop %v1069
  %v1102 = vrsqrt.pop %v1070
  %v1103 = vrsqrt.pop %v1071
  %v1104 = vrsqrt.pop %v1072
  %v1105 = vrsqrt.pop %v1073
  %v1106 = vrsqrt.pop %v1074
  %v1107 = vrsqrt.pop %v1075
  %v1108 = vrsqrt.pop %v1076
  %v1109 = vmul.f32 %v791, %v1077
  %v1110 = vmul.f32 %v796, %v1078
  %v1111 = vmul.f32 %v801, %v1079
  %v1112 = vmul.f32 %v806, %v1080
  %v1113 = vmul.f32 %v811, %v1081
  %v1114 = vmul.f32 %v816, %v1082
  %v1115 = vmul.f32 %v821, %v1083
  %v1116 = vmul.f32 %v826, %v1084
  %v1117 = vmul.f32 %v831, %v1085
  %v1118 = vmul.f32 %v836, %v1086
  %v1119 = vmul.f32 %v841, %v1087
  %v1120 = vmul.f32 %v846, %v1088
  %v1121 = vmul.f32 %v851, %v1089
  %v1122 = vmul.f32 %v856, %v1090
  %v1123 = vmul.f32 %v861, %v1091
  %v1124 = vmul.f32 %v866, %v1092
  %v1125 = vmul.f32 %v871, %v1093
  %v1126 = vmul.f32 %v876, %v1094
  %v1127 = vmul.f32 %v881, %v1095
  %v1128 = vmul.f32 %v886, %v1096
  %v1129 = vmul.f32 %v891, %v1097
  %v1130 = vmul.f32 %v896, %v1098
  %v1131 = vmul.f32 %v901, %v1099
  %v1132 = vmul.f32 %v906, %v1100
  %v1133 = vmul.f32 %v911, %v1101
  %v1134 = vmul.f32 %v916, %v1102
  %v1135 = vmul.f32 %v921, %v1103
  %v1136 = vmul.f32 %v926, %v1104
  %v1137 = vmul.f32 %v931, %v1105
  %v1138 = vmul.f32 %v936, %v1106
  %v1139 = vmul.f32 %v941, %v1107
  %v1140 = vmul.f32 %v946, %v1108
  %1141 = vst [vmem:[%s7] sm:$0xff] %v1109
  %1142 = vst [vmem:[%s7 + $0x8] sm:$0xff] %v1110
  %1143 = vst [vmem:[%s7 + $0x10] sm:$0xff] %v1111
  %1144 = vst [vmem:[%s7 + $0x18] sm:$0xff] %v1112
  %1145 = vst [vmem:[%s7 + $0x20] sm:$0xff] %v1113
  %1146 = vst [vmem:[%s7 + $0x28] sm:$0xff] %v1114
  %1147 = vst [vmem:[%s7 + $0x30] sm:$0xff] %v1115
  %1148 = vst [vmem:[%s7 + $0x38] sm:$0xff] %v1116
  %1149 = vst [vmem:[%s7 + $0x40] sm:$0xff] %v1117
  %1150 = vst [vmem:[%s7 + $0x48] sm:$0xff] %v1118
  %1151 = vst [vmem:[%s7 + $0x50] sm:$0xff] %v1119
  %1152 = vst [vmem:[%s7 + $0x58] sm:$0xff] %v1120
  %1153 = vst [vmem:[%s7 + $0x60] sm:$0xff] %v1121
  %1154 = vst [vmem:[%s7 + $0x68] sm:$0xff] %v1122
  %1155 = vst [vmem:[%s7 + $0x70] sm:$0xff] %v1123
  %1156 = vst [vmem:[%s7 + $0x78] sm:$0xff] %v1124
  %1157 = vst [vmem:[%s7 + $0x80] sm:$0xff] %v1125
  %1158 = vst [vmem:[%s7 + $0x88] sm:$0xff] %v1126
  %1159 = vst [vmem:[%s7 + $0x90] sm:$0xff] %v1127
  %1160 = vst [vmem:[%s7 + $0x98] sm:$0xff] %v1128
  %1161 = vst [vmem:[%s7 + $0xa0] sm:$0xff] %v1129
  %1162 = vst [vmem:[%s7 + $0xa8] sm:$0xff] %v1130
  %1163 = vst [vmem:[%s7 + $0xb0] sm:$0xff] %v1131
  %1164 = vst [vmem:[%s7 + $0xb8] sm:$0xff] %v1132
  %1165 = vst [vmem:[%s7 + $0xc0] sm:$0xff] %v1133
  %1166 = vst [vmem:[%s7 + $0xc8] sm:$0xff] %v1134
  %1167 = vst [vmem:[%s7 + $0xd0] sm:$0xff] %v1135
  %1168 = vst [vmem:[%s7 + $0xd8] sm:$0xff] %v1136
  %1169 = vst [vmem:[%s7 + $0xe0] sm:$0xff] %v1137
  %1170 = vst [vmem:[%s7 + $0xe8] sm:$0xff] %v1138
  %1171 = vst [vmem:[%s7 + $0xf0] sm:$0xff] %v1139
  %1172 = vst [vmem:[%s7 + $0xf8] sm:$0xff] %v1140
  // Predicated region
  $region30: #{mlp_forward.1} parent=0 // pred_check
    _
  $region31: #{mlp_forward.1} parent=0 // pred_check_branch
    %1174 = sbr.rel (0) target = $region33
  $region32: #{mlp_forward.1} parent=0 // pred_region
    _
  $region33: #{mlp_forward.1} parent=0 // pred_fallthru
    _
  // Predicated region
  $region34: #{mlp_forward.1} parent=0 // pred_check
    _
  $region35: #{mlp_forward.1} parent=0 // pred_check_branch
    %1176 = sbr.rel (0) target = $region37
  $region36: #{mlp_forward.1} parent=0 // pred_region
    _
  $region37: #{mlp_forward.1} parent=0 // pred_fallthru
    _

</llo_original>
